<compile_context>
chip_gen: v5e
topology: v5e:2x2
jax: 0.10.0
libtpu: 0.0.40
codegen_flags: <defaults>
</compile_context>

<pallas_src>
import math

import jax
import jax.numpy as jnp
from jax.experimental import pallas as pl
from jax.experimental.pallas import tpu as pltpu


def _round_up(x, m):
    return ((x + m - 1) // m) * m


def _vmem_capacity_bytes():
    """Physical per-core VMEM; conservative fallback = 64 MiB (v7x)."""
    try:
        cap = getattr(pltpu.get_tpu_info(), "vmem_capacity_bytes", None)
        if cap:
            return int(cap)
    except Exception:
        pass
    return 64 << 20


def _choose_k_tiling(D, tk_max):
    """Split the reduction dim into num_k tiles of size tk (multiple of 512),
    minimizing zero padding for awkward D (e.g. D=2049 -> tk=2560, not 4096)."""
    num_k = max(1, -(-D // tk_max))
    tk = _round_up(max(-(-D // num_k), 1), 512)
    d_pad = num_k * tk
    return tk, d_pad, num_k


# ----------------------------------------------------------------------------
# Kernels
# ----------------------------------------------------------------------------
def _mlp_kernel_ktiled(x_ref, w1_ref, b1_ref, w2_ref, b2_ref, o_ref, acc_ref):
    """K-tiled path (num_k > 1). Grid axis 0 walks the padded reduction dim.
      x_ref  : [M_pad, tk]      bf16 (pre-cast in the wrapper)
      w1_ref : [tk, hidden]     bf16 (streamed, double-buffered by Pallas)
      b1_ref : [1, hidden]      f32  (resident)
      w2_ref : [hidden, O_pad]  bf16 (resident)
      b2_ref : [1, O_pad]       f32  (resident)
      o_ref  : [M_pad, O_pad]   f32  (resident, lane-dense: O_pad % 128 == 0)
      acc_ref: [M_pad, hidden]  f32  VMEM accumulator, persists across k
    """
    k = pl.program_id(0)

    @pl.when(k == 0)
    def _init():
        acc_ref[...] = jnp.zeros_like(acc_ref)

    # bf16 operands on the MXU, f32 accumulation. Inner loop is pure MXU+DMA.
    acc_ref[...] += jnp.dot(x_ref[...], w1_ref[...],
                            preferred_element_type=jnp.float32)

    # Epilogue (bias + ReLU + second matmul + bias) only on the last K step.
    @pl.when(k == pl.num_programs(0) - 1)
    def _finalize():
        h = jnp.maximum(acc_ref[...] + b1_ref[...], 0.0)
        y = jnp.dot(h.astype(jnp.bfloat16), w2_ref[...],
                    preferred_element_type=jnp.float32)
        o_ref[...] = (y + b2_ref[...]).astype(o_ref.dtype)


def _mlp_kernel_single(x_ref, w1_ref, b1_ref, w2_ref, b2_ref, o_ref):
    """Single-K path (num_k == 1): no accumulator scratch, no pl.when gates."""
    h = jnp.maximum(
        jnp.dot(x_ref[...], w1_ref[...], preferred_element_type=jnp.float32)
        + b1_ref[...], 0.0)
    y = jnp.dot(h.astype(jnp.bfloat16), w2_ref[...],
                preferred_element_type=jnp.float32)
    o_ref[...] = (y + b2_ref[...]).astype(o_ref.dtype)


# ----------------------------------------------------------------------------
# One-time weight preprocessing (hoisted out of the per-call path)
# ----------------------------------------------------------------------------
def prepare_params(w1, b1, w2, b2):
    """Pad / cast the weights ONCE so each forward reads exactly one pass of
    pre-padded bf16 W1/W2 bytes from HBM (the kernel is W1-bandwidth bound)."""
    D, hidden = w1.shape
    out_dim = w2.shape[1]

    vmem_cap = _vmem_capacity_bytes()
    # Generation-aware K-tile cap: bigger tiles amortize the ~0.35 us/step
    # overhead; 128 MiB parts (v5e/v6e) can afford a deeper tile than v7x.
    tk_max = 8192 if vmem_cap <= (64 << 20) else 16384
    tk, d_pad, num_k = _choose_k_tiling(D, tk_max)
    o_pad = _round_up(max(out_dim, 128), 128)   # lane-dense output store

    w1_p = jnp.zeros((d_pad, hidden), jnp.bfloat16).at[:D, :].set(
        w1.astype(jnp.bfloat16))
    b1_p = b1.astype(jnp.float32).reshape(1, hidden)
    w2_p = jnp.zeros((hidden, o_pad), jnp.bfloat16).at[:, :out_dim].set(
        w2.astype(jnp.bfloat16))
    b2_p = jnp.zeros((1, o_pad), jnp.float32).at[0, :out_dim].set(
        b2.astype(jnp.float32))

    # TODO(synk): if a ~2x bandwidth cut is worth the accuracy hit, store W1 as
    # int8 (v5e/v6e MXU) or fp8 (v7x) with per-channel scales in the epilogue.
    return {
        "w1_p": w1_p, "b1_p": b1_p, "w2_p": w2_p, "b2_p": b2_p,
        "D": D, "hidden": hidden, "out_dim": out_dim,
        "tk": tk, "d_pad": d_pad, "num_k": num_k, "o_pad": o_pad,
        "vmem_cap": vmem_cap,
    }


# ----------------------------------------------------------------------------
# Forward
# ----------------------------------------------------------------------------
def mlp_forward(x, params):
    """x: [B, T, C, H, W] float32 -> logits [B, out_dim]; same math as
    MLP_model.forward (flatten -> Linear(512) -> ReLU -> Linear(out_dim))."""
    B = x.shape[0]
    D = math.prod(x.shape[1:])
    assert D == params["D"], f"input_dim mismatch: {D} vs {params['D']}"

    hidden = params["hidden"]
    out_dim = params["out_dim"]
    tk, d_pad, num_k, o_pad = (params["tk"], params["d_pad"],
                               params["num_k"], params["o_pad"])

    # bf16 activations: >=16 sublanes; cast folded into the padding copy so the
    # x HBM->VMEM DMA is half the f32 size and the per-step VPU cast is gone.
    m_pad = _round_up(max(B, 16), 16)
    x_p = jnp.zeros((m_pad, d_pad), jnp.bfloat16).at[:B, :D].set(
        x.reshape(B, D).astype(jnp.bfloat16))

    # ---- VMEM budget: tight accounting (streamed operands double-buffered,
    # resident operands / constant-index-map output counted once) -------------
    streamed = 2 * (m_pad * tk * 2 + tk * hidden * 2)          # x, w1 (bf16, x2 bufs)
    resident = (hidden * 4 + hidden * o_pad * 2 + o_pad * 4    # b1, w2, b2
                + m_pad * o_pad * 4                            # output
                + (m_pad * hidden * 4 if num_k > 1 else 0))    # accumulator
    vmem_needed = int(1.25 * (streamed + resident)) + (2 << 20)
    vmem_cap = params["vmem_cap"]
    vmem_limit = int(min(max(vmem_needed, 16 << 20),
                         max(32 << 20, vmem_cap - (16 << 20))))

    cost = pl.CostEstimate(
        flops=2 * B * D * hidden + 2 * B * hidden * out_dim,
        transcendentals=0,
        bytes_accessed=(x_p.size * 2 + params["w1_p"].size * 2
                        + params["w2_p"].size * 2
                        + params["b1_p"].size * 4 + params["b2_p"].size * 4
                        + m_pad * o_pad * 4),
    )

    if num_k == 1:
        kernel = _mlp_kernel_single
        scratch = []
    else:
        kernel = _mlp_kernel_ktiled
        scratch = [pltpu.VMEM((m_pad, hidden), jnp.float32)]

    grid_spec = pltpu.PrefetchScalarGridSpec(
        num_scalar_prefetch=0,
        grid=(num_k,),
        in_specs=[
            pl.BlockSpec((m_pad, tk), lambda k: (0, k)),       # x   (K-tiled)
            # TODO(synk): sweep pipeline_mode=pl.Buffered(3) on w1 if a trace
            # shows exposed DMA at step turnaround on v7x.
            pl.BlockSpec((tk, hidden), lambda k: (k, 0)),      # w1  (K-tiled stream)
            pl.BlockSpec((1, hidden), lambda k: (0, 0)),       # b1  (resident)
            pl.BlockSpec((hidden, o_pad), lambda k: (0, 0)),   # w2  (resident)
            pl.BlockSpec((1, o_pad), lambda k: (0, 0)),        # b2  (resident)
        ],
        out_specs=pl.BlockSpec((m_pad, o_pad), lambda k: (0, 0)),
        scratch_shapes=scratch,
    )

    # TODO(synk): for large B (>=128) add an M grid axis marked "parallel" so
    # the batch shards across v7x's two TensorCores; at tiny B it is overhead.
    out_p = pl.pallas_call(
        kernel,
        out_shape=jax.ShapeDtypeStruct((m_pad, o_pad), jnp.float32),
        grid_spec=grid_spec,
        compiler_params=pltpu.CompilerParams(
            dimension_semantics=("arbitrary",),
            vmem_limit_bytes=vmem_limit,
        ),
        cost_estimate=cost,
    )(x_p, params["w1_p"], params["b1_p"], params["w2_p"], params["b2_p"])

    return out_p[:B, :out_dim]


def init_params(key, input_dim, hidden, output_dim):
    """Deterministic init mimicking nn.Linear defaults (uniform +- 1/sqrt(fan_in))."""
    k1, k2, k3, k4 = jax.random.split(key, 4)
    lim1 = 1.0 / jnp.sqrt(jnp.float32(input_dim))
    lim2 = 1.0 / jnp.sqrt(jnp.float32(hidden))
    w1 = jax.random.uniform(k1, (input_dim, hidden), jnp.float32, -lim1, lim1)
    b1 = jax.random.uniform(k2, (hidden,), jnp.float32, -lim1, lim1)
    w2 = jax.random.uniform(k3, (hidden, output_dim), jnp.float32, -lim2, lim2)
    b2 = jax.random.uniform(k4, (output_dim,), jnp.float32, -lim2, lim2)
    return w1, b1, w2, b2


if __name__ == "__main__":
    # Small shapes consistent with the module: x [B, T, 4, H, W]
    B, T, C, H, W = 2, 2, 4, 8, 8
    input_dim = T * C * H * W          # 512
    hidden = 512                       # fixed by the module
    output_dim = 10

    key = jax.random.PRNGKey(0)
    kx, kp = jax.random.split(key)
    x = jax.random.normal(kx, (B, T, C, H, W), jnp.float32)
    w1, b1, w2, b2 = init_params(kp, input_dim, hidden, output_dim)

    params = prepare_params(w1, b1, w2, b2)        # one-time weight prep (hoisted)
    fwd = jax.jit(lambda xx: mlp_forward(xx, params))

    logits = jax.block_until_ready(fwd(x))
    assert logits.shape == (B, output_dim)

    # Reference with the same bf16-matmul / f32-accumulate math as the kernel.
    x2d = x.reshape(B, input_dim)
    h_ref = jnp.maximum(
        jnp.dot(x2d.astype(jnp.bfloat16), w1.astype(jnp.bfloat16),
                preferred_element_type=jnp.float32) + b1, 0.0)
    ref_bf16 = jnp.dot(h_ref.astype(jnp.bfloat16), w2.astype(jnp.bfloat16),
                       preferred_element_type=jnp.float32) + b2
    assert jnp.allclose(logits, ref_bf16, atol=2e-3, rtol=2e-3)

    # Sanity vs. the full-f32 PyTorch-module math (bounded bf16 drift).
    ref_f32 = jnp.maximum(x2d @ w1 + b1, 0.0) @ w2 + b2
    assert jnp.allclose(logits, ref_f32, atol=5e-2, rtol=5e-2)

    print("KERNEL_OK")
</pallas_src>

<mosaic_0001>
module attributes {stable_mosaic.version = 11 : i64} {
  func.func @_mlp_kernel_single(%arg0: i32, %arg1: memref<16x512xbf16, #tpu.memory_space<vmem>>, %arg2: memref<512x512xbf16, #tpu.memory_space<vmem>>, %arg3: memref<1x512xf32, #tpu.memory_space<vmem>>, %arg4: memref<512x128xbf16, #tpu.memory_space<vmem>>, %arg5: memref<1x128xf32, #tpu.memory_space<vmem>>, %arg6: memref<16x128xf32, #tpu.memory_space<vmem>>) attributes {dimension_semantics = [#tpu.dimension_semantics<arbitrary>], iteration_bounds = array<i64: 1>, scalar_prefetch = 0 : i64, scratch_operands = 0 : i64, tpu.core_type = #tpu.core_type<tc>, window_params = [{transform_indices = @transform_0, window_bounds = array<i64: 16, 512>}, {transform_indices = @transform_1, window_bounds = array<i64: 512, 512>}, {pipeline_mode = #tpu.pipeline_mode<synchronous>, transform_indices = @transform_2, window_bounds = array<i64: 1, 512>}, {pipeline_mode = #tpu.pipeline_mode<synchronous>, transform_indices = @transform_3, window_bounds = array<i64: 512, 128>}, {pipeline_mode = #tpu.pipeline_mode<synchronous>, transform_indices = @transform_4, window_bounds = array<i64: 1, 128>}, {pipeline_mode = #tpu.pipeline_mode<synchronous>, transform_indices = @transform_5, window_bounds = array<i64: 16, 128>}]} {
    %c0 = arith.constant 0 : index
    %c0_0 = arith.constant 0 : index
    %0 = vector.load %arg1[%c0, %c0_0] : memref<16x512xbf16, #tpu.memory_space<vmem>>, vector<16x512xbf16>
    %c0_1 = arith.constant 0 : index
    %c0_2 = arith.constant 0 : index
    %1 = vector.load %arg2[%c0_1, %c0_2] : memref<512x512xbf16, #tpu.memory_space<vmem>>, vector<512x512xbf16>
    %cst = arith.constant dense<0.000000e+00> : vector<16x512xf32>
    %2 = tpu.matmul %0, %1, %cst {dimension_numbers = #tpu.dot_dimension_numbers<[1], [0], [0], [1], [0, 0, 1, 1], [], []>} : vector<16x512xbf16>, vector<512x512xbf16>, vector<16x512xf32> -> vector<16x512xf32>
    %c0_3 = arith.constant 0 : index
    %c0_4 = arith.constant 0 : index
    %3 = vector.load %arg3[%c0_3, %c0_4] : memref<1x512xf32, #tpu.memory_space<vmem>>, vector<1x512xf32>
    %4 = vector.broadcast %3 : vector<1x512xf32> to vector<16x512xf32>
    %5 = arith.addf %2, %4 : vector<16x512xf32>
    %cst_5 = arith.constant 0.000000e+00 : f32
    %6 = vector.broadcast %cst_5 : f32 to vector<16x512xf32>
    %7 = arith.maximumf %5, %6 : vector<16x512xf32>
    %8 = arith.truncf %7 : vector<16x512xf32> to vector<16x512xbf16>
    %c0_6 = arith.constant 0 : index
    %c0_7 = arith.constant 0 : index
    %9 = vector.load %arg4[%c0_6, %c0_7] : memref<512x128xbf16, #tpu.memory_space<vmem>>, vector<512x128xbf16>
    %cst_8 = arith.constant dense<0.000000e+00> : vector<16x128xf32>
    %10 = tpu.matmul %8, %9, %cst_8 {dimension_numbers = #tpu.dot_dimension_numbers<[1], [0], [0], [1], [0, 0, 1, 1], [], []>} : vector<16x512xbf16>, vector<512x128xbf16>, vector<16x128xf32> -> vector<16x128xf32>
    %c0_9 = arith.constant 0 : index
    %c0_10 = arith.constant 0 : index
    %11 = vector.load %arg5[%c0_9, %c0_10] : memref<1x128xf32, #tpu.memory_space<vmem>>, vector<1x128xf32>
    %12 = vector.broadcast %11 : vector<1x128xf32> to vector<16x128xf32>
    %13 = arith.addf %10, %12 : vector<16x128xf32>
    %c0_11 = arith.constant 0 : index
    %c0_12 = arith.constant 0 : index
    %14 = vector.load %arg6[%c0_11, %c0_12] : memref<16x128xf32, #tpu.memory_space<vmem>>, vector<16x128xf32>
    tpu.vector_store %arg6[%c0_11, %c0_12], %13 {strides = array<i32>} : memref<16x128xf32, #tpu.memory_space<vmem>>, vector<16x128xf32>,
    return
  }
  func.func @transform_0(%arg0: i32) -> (i32, i32) {
    %c0_i32 = arith.constant 0 : i32
    %c0_i32_0 = arith.constant 0 : i32
    return %c0_i32, %arg0 : i32, i32
  }
  func.func @transform_1(%arg0: i32) -> (i32, i32) {
    %c0_i32 = arith.constant 0 : i32
    %c0_i32_0 = arith.constant 0 : i32
    return %arg0, %c0_i32 : i32, i32
  }
  func.func @transform_2(%arg0: i32) -> (i32, i32) {
    %c0_i32 = arith.constant 0 : i32
    %c0_i32_0 = arith.constant 0 : i32
    %c0_i32_1 = arith.constant 0 : i32
    return %c0_i32, %c0_i32_0 : i32, i32
  }
  func.func @transform_3(%arg0: i32) -> (i32, i32) {
    %c0_i32 = arith.constant 0 : i32
    %c0_i32_0 = arith.constant 0 : i32
    %c0_i32_1 = arith.constant 0 : i32
    return %c0_i32, %c0_i32_0 : i32, i32
  }
  func.func @transform_4(%arg0: i32) -> (i32, i32) {
    %c0_i32 = arith.constant 0 : i32
    %c0_i32_0 = arith.constant 0 : i32
    %c0_i32_1 = arith.constant 0 : i32
    return %c0_i32, %c0_i32_0 : i32, i32
  }
  func.func @transform_5(%arg0: i32) -> (i32, i32) {
    %c0_i32 = arith.constant 0 : i32
    %c0_i32_0 = arith.constant 0 : i32
    %c0_i32_1 = arith.constant 0 : i32
    return %c0_i32, %c0_i32_0 : i32, i32
  }
}

</mosaic_0001>

<llo_original>
// kernel: _lambda_.1
$region0: #{_lambda_.1}
  #allocation0 [shape = 'u32[]', space=smem, size = 0x4, offset = 0x4, fixed_abs, tag = 'smem constant byte address 0x4 - core index']
  #allocation1 [shape = 'u32[72,128]{1,0:T(1,128)}', space=vmem, size = 0x9000, scoped, tag = 'internal scratch']
  %s0 = inlined_call_operand.vmem [shape: bf16[16,512], index: 0, kind: input, shape index: {}]
  %s1 = inlined_call_operand.hbm [shape: bf16[512,512], index: 1, kind: input, shape index: {}]
  %s2 = inlined_call_operand.vmem [shape: f32[1,512], index: 2, kind: input, shape index: {}]
  %s3 = inlined_call_operand.vmem [shape: bf16[512,128], index: 3, kind: input, shape index: {}]
  %s4 = inlined_call_operand.vmem [shape: f32[1,128], index: 4, kind: input, shape index: {}]
  %s5 = inlined_call_operand.vmem [shape: f32[16,128], index: 5, kind: output, shape index: {}]
  %s6 = sld [smem:[#allocation0]]
  $region34: #{_lambda_.1} parent=0
    _
  %s8 = ssub.s32 1, %s6
  %s9 = scalar_select 0, %s8, %s6
  $region1: #{_lambda_.1} parent=0
    #allocation2 [shape = 'u8[524288]{0}', space=vmem, size = 0x80000, scoped, tag = 'input window, operand 1, single buffered']
    #allocation3 [shape = 's32[1]{0}', space=sflag, size = 0x4, scoped, tag = 'scoped memory for _lambda_.1']
    %10 = vsyncpa [#allocation3], 0
    // Predicated region
    $region2: #{_lambda_.1} parent=1 // pred_check
      _
    $region3: #{_lambda_.1} parent=1 // pred_check_branch
      %12 = sbr.rel (0) target = $region5
    $region4: #{_lambda_.1} parent=1 // pred_region
      _
    $region5: #{_lambda_.1} parent=1 // pred_fallthru
      _
    // Predicated region
    $region6: #{_lambda_.1} parent=1 // pred_check
      _
    $region7: #{_lambda_.1} parent=1 // pred_check_branch
      %14 = sbr.rel (0) target = $region9
    $region8: #{_lambda_.1} parent=1 // pred_region
      %16 = vsyncadd [#allocation3], 0
      %s17 = sshll.u32 %s1, 4
      %s18 = int_to_ptr.hbm [resolvable:$true] %s17
      %s19 = sshll.u32 [#allocation2], 4
      %s20 = int_to_ptr.vmem [resolvable:$true] %s19
      %25 = dma.hbm_to_vmem [thread:$0]  %s18, 16384, %s20, [#allocation3], 256, 256, 16
    $region9: #{_lambda_.1} parent=1 // pred_fallthru
      _
    // Predicated region
    $region10: #{_lambda_.1} parent=1 // pred_check
      _
    $region11: #{_lambda_.1} parent=1 // pred_check_branch
      %27 = sbr.rel (0) target = $region13
    $region12: #{_lambda_.1} parent=1 // pred_region
      _
    $region13: #{_lambda_.1} parent=1 // pred_fallthru
      _
    // Predicated region
    $region14: #{_lambda_.1} parent=1 // pred_check
      _
    $region15: #{_lambda_.1} parent=1 // pred_check_branch
      %29 = sbr.rel (0) target = $region17
    $region16: #{_lambda_.1} parent=1 // pred_region
      _
    $region17: #{_lambda_.1} parent=1 // pred_fallthru
      _
    // Predicated region
    $region18: #{_lambda_.1} parent=1 // pred_check
      _
    $region19: #{_lambda_.1} parent=1 // pred_check_branch
      %31 = sbr.rel (0) target = $region21
    $region20: #{_lambda_.1} parent=1 // pred_region
      _
    $region21: #{_lambda_.1} parent=1 // pred_fallthru
      _
    // Predicated region
    $region22: #{_lambda_.1} parent=1 // pred_check
      _
    $region23: #{_lambda_.1} parent=1 // pred_check_branch
      %33 = sbr.rel (0) target = $region25
    $region24: #{_lambda_.1} parent=1 // pred_region
      %35 = dma.done [#allocation3], 16384
    $region25: #{_lambda_.1} parent=1 // pred_fallthru
      _
    %v36 = vld [vmem:[%s0] sm:$0xff]
    %v37 = vld [vmem:[%s0 + $0x8] sm:$0xff]
    %v38 = vld [vmem:[%s0 + $0x10] sm:$0xff]
    %v39 = vld [vmem:[%s0 + $0x18] sm:$0xff]
    %v40 = vld [vmem:[#allocation2] sm:$0xff]
    %v41 = vld [vmem:[#allocation2 + $0x8] sm:$0xff]
    %v42 = vld [vmem:[#allocation2 + $0x10] sm:$0xff]
    %v43 = vld [vmem:[#allocation2 + $0x18] sm:$0xff]
    %v44 = vld [vmem:[#allocation2 + $0x20] sm:$0xff]
    %v45 = vld [vmem:[#allocation2 + $0x28] sm:$0xff]
    %v46 = vld [vmem:[#allocation2 + $0x30] sm:$0xff]
    %v47 = vld [vmem:[#allocation2 + $0x38] sm:$0xff]
    %v48 = vld [vmem:[#allocation2 + $0x40] sm:$0xff]
    %v49 = vld [vmem:[#allocation2 + $0x48] sm:$0xff]
    %v50 = vld [vmem:[#allocation2 + $0x50] sm:$0xff]
    %v51 = vld [vmem:[#allocation2 + $0x58] sm:$0xff]
    %v52 = vld [vmem:[#allocation2 + $0x60] sm:$0xff]
    %v53 = vld [vmem:[#allocation2 + $0x68] sm:$0xff]
    %v54 = vld [vmem:[#allocation2 + $0x70] sm:$0xff]
    %v55 = vld [vmem:[#allocation2 + $0x78] sm:$0xff]
    %v56 = vld [vmem:[#allocation2 + $0x80] sm:$0xff]
    %v57 = vld [vmem:[#allocation2 + $0x88] sm:$0xff]
    %v58 = vld [vmem:[#allocation2 + $0x90] sm:$0xff]
    %v59 = vld [vmem:[#allocation2 + $0x98] sm:$0xff]
    %v60 = vld [vmem:[#allocation2 + $0xa0] sm:$0xff]
    %v61 = vld [vmem:[#allocation2 + $0xa8] sm:$0xff]
    %v62 = vld [vmem:[#allocation2 + $0xb0] sm:$0xff]
    %v63 = vld [vmem:[#allocation2 + $0xb8] sm:$0xff]
    %v64 = vld [vmem:[#allocation2 + $0xc0] sm:$0xff]
    %v65 = vld [vmem:[#allocation2 + $0xc8] sm:$0xff]
    %v66 = vld [vmem:[#allocation2 + $0xd0] sm:$0xff]
    %v67 = vld [vmem:[#allocation2 + $0xd8] sm:$0xff]
    %v68 = vld [vmem:[#allocation2 + $0xe0] sm:$0xff]
    %v69 = vld [vmem:[#allocation2 + $0xe8] sm:$0xff]
    %v70 = vld [vmem:[#allocation2 + $0xf0] sm:$0xff]
    %v71 = vld [vmem:[#allocation2 + $0xf8] sm:$0xff]
    %v72 = vld [vmem:[#allocation2 + $0x100] sm:$0xff]
    %v73 = vld [vmem:[#allocation2 + $0x108] sm:$0xff]
    %v74 = vld [vmem:[#allocation2 + $0x110] sm:$0xff]
    %v75 = vld [vmem:[#allocation2 + $0x118] sm:$0xff]
    %v76 = vld [vmem:[#allocation2 + $0x120] sm:$0xff]
    %v77 = vld [vmem:[#allocation2 + $0x128] sm:$0xff]
    %v78 = vld [vmem:[#allocation2 + $0x130] sm:$0xff]
    %v79 = vld [vmem:[#allocation2 + $0x138] sm:$0xff]
    %v80 = vld [vmem:[#allocation2 + $0x140] sm:$0xff]
    %v81 = vld [vmem:[#allocation2 + $0x148] sm:$0xff]
    %v82 = vld [vmem:[#allocation2 + $0x150] sm:$0xff]
    %v83 = vld [vmem:[#allocation2 + $0x158] sm:$0xff]
    %v84 = vld [vmem:[#allocation2 + $0x160] sm:$0xff]
    %v85 = vld [vmem:[#allocation2 + $0x168] sm:$0xff]
    %v86 = vld [vmem:[#allocation2 + $0x170] sm:$0xff]
    %v87 = vld [vmem:[#allocation2 + $0x178] sm:$0xff]
    %v88 = vld [vmem:[#allocation2 + $0x180] sm:$0xff]
    %v89 = vld [vmem:[#allocation2 + $0x188] sm:$0xff]
    %v90 = vld [vmem:[#allocation2 + $0x190] sm:$0xff]
    %v91 = vld [vmem:[#allocation2 + $0x198] sm:$0xff]
    %v92 = vld [vmem:[#allocation2 + $0x1a0] sm:$0xff]
    %v93 = vld [vmem:[#allocation2 + $0x1a8] sm:$0xff]
    %v94 = vld [vmem:[#allocation2 + $0x1b0] sm:$0xff]
    %v95 = vld [vmem:[#allocation2 + $0x1b8] sm:$0xff]
    %v96 = vld [vmem:[#allocation2 + $0x1c0] sm:$0xff]
    %v97 = vld [vmem:[#allocation2 + $0x1c8] sm:$0xff]
    %v98 = vld [vmem:[#allocation2 + $0x1d0] sm:$0xff]
    %v99 = vld [vmem:[#allocation2 + $0x1d8] sm:$0xff]
    %v100 = vld [vmem:[#allocation2 + $0x1e0] sm:$0xff]
    %v101 = vld [vmem:[#allocation2 + $0x1e8] sm:$0xff]
    %v102 = vld [vmem:[#allocation2 + $0x1f0] sm:$0xff]
    %v103 = vld [vmem:[#allocation2 + $0x1f8] sm:$0xff]
    %v104 = vld [vmem:[#allocation2 + $0x200] sm:$0xff]
    %v105 = vld [vmem:[#allocation2 + $0x208] sm:$0xff]
    %v106 = vld [vmem:[#allocation2 + $0x210] sm:$0xff]
    %v107 = vld [vmem:[#allocation2 + $0x218] sm:$0xff]
    %v108 = vld [vmem:[#allocation2 + $0x220] sm:$0xff]
    %v109 = vld [vmem:[#allocation2 + $0x228] sm:$0xff]
    %v110 = vld [vmem:[#allocation2 + $0x230] sm:$0xff]
    %v111 = vld [vmem:[#allocation2 + $0x238] sm:$0xff]
    %v112 = vld [vmem:[#allocation2 + $0x240] sm:$0xff]
    %v113 = vld [vmem:[#allocation2 + $0x248] sm:$0xff]
    %v114 = vld [vmem:[#allocation2 + $0x250] sm:$0xff]
    %v115 = vld [vmem:[#allocation2 + $0x258] sm:$0xff]
    %v116 = vld [vmem:[#allocation2 + $0x260] sm:$0xff]
    %v117 = vld [vmem:[#allocation2 + $0x268] sm:$0xff]
    %v118 = vld [vmem:[#allocation2 + $0x270] sm:$0xff]
    %v119 = vld [vmem:[#allocation2 + $0x278] sm:$0xff]
    %v120 = vld [vmem:[#allocation2 + $0x280] sm:$0xff]
    %v121 = vld [vmem:[#allocation2 + $0x288] sm:$0xff]
    %v122 = vld [vmem:[#allocation2 + $0x290] sm:$0xff]
    %v123 = vld [vmem:[#allocation2 + $0x298] sm:$0xff]
    %v124 = vld [vmem:[#allocation2 + $0x2a0] sm:$0xff]
    %v125 = vld [vmem:[#allocation2 + $0x2a8] sm:$0xff]
    %v126 = vld [vmem:[#allocation2 + $0x2b0] sm:$0xff]
    %v127 = vld [vmem:[#allocation2 + $0x2b8] sm:$0xff]
    %v128 = vld [vmem:[#allocation2 + $0x2c0] sm:$0xff]
    %v129 = vld [vmem:[#allocation2 + $0x2c8] sm:$0xff]
    %v130 = vld [vmem:[#allocation2 + $0x2d0] sm:$0xff]
    %v131 = vld [vmem:[#allocation2 + $0x2d8] sm:$0xff]
    %v132 = vld [vmem:[#allocation2 + $0x2e0] sm:$0xff]
    %v133 = vld [vmem:[#allocation2 + $0x2e8] sm:$0xff]
    %v134 = vld [vmem:[#allocation2 + $0x2f0] sm:$0xff]
    %v135 = vld [vmem:[#allocation2 + $0x2f8] sm:$0xff]
    %v136 = vld [vmem:[#allocation2 + $0x300] sm:$0xff]
    %v137 = vld [vmem:[#allocation2 + $0x308] sm:$0xff]
    %v138 = vld [vmem:[#allocation2 + $0x310] sm:$0xff]
    %v139 = vld [vmem:[#allocation2 + $0x318] sm:$0xff]
    %v140 = vld [vmem:[#allocation2 + $0x320] sm:$0xff]
    %v141 = vld [vmem:[#allocation2 + $0x328] sm:$0xff]
    %v142 = vld [vmem:[#allocation2 + $0x330] sm:$0xff]
    %v143 = vld [vmem:[#allocation2 + $0x338] sm:$0xff]
    %v144 = vld [vmem:[#allocation2 + $0x340] sm:$0xff]
    %v145 = vld [vmem:[#allocation2 + $0x348] sm:$0xff]
    %v146 = vld [vmem:[#allocation2 + $0x350] sm:$0xff]
    %v147 = vld [vmem:[#allocation2 + $0x358] sm:$0xff]
    %v148 = vld [vmem:[#allocation2 + $0x360] sm:$0xff]
    %v149 = vld [vmem:[#allocation2 + $0x368] sm:$0xff]
    %v150 = vld [vmem:[#allocation2 + $0x370] sm:$0xff]
    %v151 = vld [vmem:[#allocation2 + $0x378] sm:$0xff]
    %v152 = vld [vmem:[#allocation2 + $0x380] sm:$0xff]
    %v153 = vld [vmem:[#allocation2 + $0x388] sm:$0xff]
    %v154 = vld [vmem:[#allocation2 + $0x390] sm:$0xff]
    %v155 = vld [vmem:[#allocation2 + $0x398] sm:$0xff]
    %v156 = vld [vmem:[#allocation2 + $0x3a0] sm:$0xff]
    %v157 = vld [vmem:[#allocation2 + $0x3a8] sm:$0xff]
    %v158 = vld [vmem:[#allocation2 + $0x3b0] sm:$0xff]
    %v159 = vld [vmem:[#allocation2 + $0x3b8] sm:$0xff]
    %v160 = vld [vmem:[#allocation2 + $0x3c0] sm:$0xff]
    %v161 = vld [vmem:[#allocation2 + $0x3c8] sm:$0xff]
    %v162 = vld [vmem:[#allocation2 + $0x3d0] sm:$0xff]
    %v163 = vld [vmem:[#allocation2 + $0x3d8] sm:$0xff]
    %v164 = vld [vmem:[#allocation2 + $0x3e0] sm:$0xff]
    %v165 = vld [vmem:[#allocation2 + $0x3e8] sm:$0xff]
    %v166 = vld [vmem:[#allocation2 + $0x3f0] sm:$0xff]
    %v167 = vld [vmem:[#allocation2 + $0x3f8] sm:$0xff]
    %v168 = vld [vmem:[%s2] sm:$0xf]
    %v170 = vperm.slane %v168, 0
    %v171 = vperm.slane %v168, 1
    %v172 = vperm.slane %v168, 2
    %v173 = vperm.slane %v168, 3
    %v182 = vunpack.c.l.b16 %v36
    %v183 = vunpack.c.h.b16 %v36
    %v184 = vunpack.c.l.b16 %v37
    %v185 = vunpack.c.h.b16 %v37
    %v186 = vunpack.c.l.b16 %v38
    %v187 = vunpack.c.h.b16 %v38
    %v188 = vunpack.c.l.b16 %v39
    %v189 = vunpack.c.h.b16 %v39
    %v190 = vpack.c.b16 %v186, %v182
    %v191 = vpack.c.b16 %v187, %v183
    %v192 = vpack.c.b16 %v188, %v184
    %v193 = vpack.c.b16 %v189, %v185
    %v326 = vunpack.c.l.b16 %v40
    %v327 = vunpack.c.h.b16 %v40
    %v328 = vunpack.c.l.b16 %v41
    %v329 = vunpack.c.h.b16 %v41
    %v330 = vunpack.c.l.b16 %v42
    %v331 = vunpack.c.h.b16 %v42
    %v332 = vunpack.c.l.b16 %v43
    %v333 = vunpack.c.h.b16 %v43
    %v334 = vunpack.c.l.b16 %v44
    %v335 = vunpack.c.h.b16 %v44
    %v336 = vunpack.c.l.b16 %v45
    %v337 = vunpack.c.h.b16 %v45
    %v338 = vunpack.c.l.b16 %v46
    %v339 = vunpack.c.h.b16 %v46
    %v340 = vunpack.c.l.b16 %v47
    %v341 = vunpack.c.h.b16 %v47
    %v342 = vunpack.c.l.b16 %v48
    %v343 = vunpack.c.h.b16 %v48
    %v344 = vunpack.c.l.b16 %v49
    %v345 = vunpack.c.h.b16 %v49
    %v346 = vunpack.c.l.b16 %v50
    %v347 = vunpack.c.h.b16 %v50
    %v348 = vunpack.c.l.b16 %v51
    %v349 = vunpack.c.h.b16 %v51
    %v350 = vunpack.c.l.b16 %v52
    %v351 = vunpack.c.h.b16 %v52
    %v352 = vunpack.c.l.b16 %v53
    %v353 = vunpack.c.h.b16 %v53
    %v354 = vunpack.c.l.b16 %v54
    %v355 = vunpack.c.h.b16 %v54
    %v356 = vunpack.c.l.b16 %v55
    %v357 = vunpack.c.h.b16 %v55
    %v358 = vunpack.c.l.b16 %v56
    %v359 = vunpack.c.h.b16 %v56
    %v360 = vunpack.c.l.b16 %v57
    %v361 = vunpack.c.h.b16 %v57
    %v362 = vunpack.c.l.b16 %v58
    %v363 = vunpack.c.h.b16 %v58
    %v364 = vunpack.c.l.b16 %v59
    %v365 = vunpack.c.h.b16 %v59
    %v366 = vunpack.c.l.b16 %v60
    %v367 = vunpack.c.h.b16 %v60
    %v368 = vunpack.c.l.b16 %v61
    %v369 = vunpack.c.h.b16 %v61
    %v370 = vunpack.c.l.b16 %v62
    %v371 = vunpack.c.h.b16 %v62
    %v372 = vunpack.c.l.b16 %v63
    %v373 = vunpack.c.h.b16 %v63
    %v374 = vunpack.c.l.b16 %v64
    %v375 = vunpack.c.h.b16 %v64
    %v376 = vunpack.c.l.b16 %v65
    %v377 = vunpack.c.h.b16 %v65
    %v378 = vunpack.c.l.b16 %v66
    %v379 = vunpack.c.h.b16 %v66
    %v380 = vunpack.c.l.b16 %v67
    %v381 = vunpack.c.h.b16 %v67
    %v382 = vunpack.c.l.b16 %v68
    %v383 = vunpack.c.h.b16 %v68
    %v384 = vunpack.c.l.b16 %v69
    %v385 = vunpack.c.h.b16 %v69
    %v386 = vunpack.c.l.b16 %v70
    %v387 = vunpack.c.h.b16 %v70
    %v388 = vunpack.c.l.b16 %v71
    %v389 = vunpack.c.h.b16 %v71
    %v390 = vunpack.c.l.b16 %v72
    %v391 = vunpack.c.h.b16 %v72
    %v392 = vunpack.c.l.b16 %v73
    %v393 = vunpack.c.h.b16 %v73
    %v394 = vunpack.c.l.b16 %v74
    %v395 = vunpack.c.h.b16 %v74
    %v396 = vunpack.c.l.b16 %v75
    %v397 = vunpack.c.h.b16 %v75
    %v398 = vunpack.c.l.b16 %v76
    %v399 = vunpack.c.h.b16 %v76
    %v400 = vunpack.c.l.b16 %v77
    %v401 = vunpack.c.h.b16 %v77
    %v402 = vunpack.c.l.b16 %v78
    %v403 = vunpack.c.h.b16 %v78
    %v404 = vunpack.c.l.b16 %v79
    %v405 = vunpack.c.h.b16 %v79
    %v406 = vunpack.c.l.b16 %v80
    %v407 = vunpack.c.h.b16 %v80
    %v408 = vunpack.c.l.b16 %v81
    %v409 = vunpack.c.h.b16 %v81
    %v410 = vunpack.c.l.b16 %v82
    %v411 = vunpack.c.h.b16 %v82
    %v412 = vunpack.c.l.b16 %v83
    %v413 = vunpack.c.h.b16 %v83
    %v414 = vunpack.c.l.b16 %v84
    %v415 = vunpack.c.h.b16 %v84
    %v416 = vunpack.c.l.b16 %v85
    %v417 = vunpack.c.h.b16 %v85
    %v418 = vunpack.c.l.b16 %v86
    %v419 = vunpack.c.h.b16 %v86
    %v420 = vunpack.c.l.b16 %v87
    %v421 = vunpack.c.h.b16 %v87
    %v422 = vunpack.c.l.b16 %v88
    %v423 = vunpack.c.h.b16 %v88
    %v424 = vunpack.c.l.b16 %v89
    %v425 = vunpack.c.h.b16 %v89
    %v426 = vunpack.c.l.b16 %v90
    %v427 = vunpack.c.h.b16 %v90
    %v428 = vunpack.c.l.b16 %v91
    %v429 = vunpack.c.h.b16 %v91
    %v430 = vunpack.c.l.b16 %v92
    %v431 = vunpack.c.h.b16 %v92
    %v432 = vunpack.c.l.b16 %v93
    %v433 = vunpack.c.h.b16 %v93
    %v434 = vunpack.c.l.b16 %v94
    %v435 = vunpack.c.h.b16 %v94
    %v436 = vunpack.c.l.b16 %v95
    %v437 = vunpack.c.h.b16 %v95
    %v438 = vunpack.c.l.b16 %v96
    %v439 = vunpack.c.h.b16 %v96
    %v440 = vunpack.c.l.b16 %v97
    %v441 = vunpack.c.h.b16 %v97
    %v442 = vunpack.c.l.b16 %v98
    %v443 = vunpack.c.h.b16 %v98
    %v444 = vunpack.c.l.b16 %v99
    %v445 = vunpack.c.h.b16 %v99
    %v446 = vunpack.c.l.b16 %v100
    %v447 = vunpack.c.h.b16 %v100
    %v448 = vunpack.c.l.b16 %v101
    %v449 = vunpack.c.h.b16 %v101
    %v450 = vunpack.c.l.b16 %v102
    %v451 = vunpack.c.h.b16 %v102
    %v452 = vunpack.c.l.b16 %v103
    %v453 = vunpack.c.h.b16 %v103
    %v454 = vunpack.c.l.b16 %v104
    %v455 = vunpack.c.h.b16 %v104
    %v456 = vunpack.c.l.b16 %v105
    %v457 = vunpack.c.h.b16 %v105
    %v458 = vunpack.c.l.b16 %v106
    %v459 = vunpack.c.h.b16 %v106
    %v460 = vunpack.c.l.b16 %v107
    %v461 = vunpack.c.h.b16 %v107
    %v462 = vunpack.c.l.b16 %v108
    %v463 = vunpack.c.h.b16 %v108
    %v464 = vunpack.c.l.b16 %v109
    %v465 = vunpack.c.h.b16 %v109
    %v466 = vunpack.c.l.b16 %v110
    %v467 = vunpack.c.h.b16 %v110
    %v468 = vunpack.c.l.b16 %v111
    %v469 = vunpack.c.h.b16 %v111
    %v470 = vunpack.c.l.b16 %v112
    %v471 = vunpack.c.h.b16 %v112
    %v472 = vunpack.c.l.b16 %v113
    %v473 = vunpack.c.h.b16 %v113
    %v474 = vunpack.c.l.b16 %v114
    %v475 = vunpack.c.h.b16 %v114
    %v476 = vunpack.c.l.b16 %v115
    %v477 = vunpack.c.h.b16 %v115
    %v478 = vunpack.c.l.b16 %v116
    %v479 = vunpack.c.h.b16 %v116
    %v480 = vunpack.c.l.b16 %v117
    %v481 = vunpack.c.h.b16 %v117
    %v482 = vunpack.c.l.b16 %v118
    %v483 = vunpack.c.h.b16 %v118
    %v484 = vunpack.c.l.b16 %v119
    %v485 = vunpack.c.h.b16 %v119
    %v486 = vunpack.c.l.b16 %v120
    %v487 = vunpack.c.h.b16 %v120
    %v488 = vunpack.c.l.b16 %v121
    %v489 = vunpack.c.h.b16 %v121
    %v490 = vunpack.c.l.b16 %v122
    %v491 = vunpack.c.h.b16 %v122
    %v492 = vunpack.c.l.b16 %v123
    %v493 = vunpack.c.h.b16 %v123
    %v494 = vunpack.c.l.b16 %v124
    %v495 = vunpack.c.h.b16 %v124
    %v496 = vunpack.c.l.b16 %v125
    %v497 = vunpack.c.h.b16 %v125
    %v498 = vunpack.c.l.b16 %v126
    %v499 = vunpack.c.h.b16 %v126
    %v500 = vunpack.c.l.b16 %v127
    %v501 = vunpack.c.h.b16 %v127
    %v502 = vunpack.c.l.b16 %v128
    %v503 = vunpack.c.h.b16 %v128
    %v504 = vunpack.c.l.b16 %v129
    %v505 = vunpack.c.h.b16 %v129
    %v506 = vunpack.c.l.b16 %v130
    %v507 = vunpack.c.h.b16 %v130
    %v508 = vunpack.c.l.b16 %v131
    %v509 = vunpack.c.h.b16 %v131
    %v510 = vunpack.c.l.b16 %v132
    %v511 = vunpack.c.h.b16 %v132
    %v512 = vunpack.c.l.b16 %v133
    %v513 = vunpack.c.h.b16 %v133
    %v514 = vunpack.c.l.b16 %v134
    %v515 = vunpack.c.h.b16 %v134
    %v516 = vunpack.c.l.b16 %v135
    %v517 = vunpack.c.h.b16 %v135
    %v518 = vunpack.c.l.b16 %v136
    %v519 = vunpack.c.h.b16 %v136
    %v520 = vunpack.c.l.b16 %v137
    %v521 = vunpack.c.h.b16 %v137
    %v522 = vunpack.c.l.b16 %v138
    %v523 = vunpack.c.h.b16 %v138
    %v524 = vunpack.c.l.b16 %v139
    %v525 = vunpack.c.h.b16 %v139
    %v526 = vunpack.c.l.b16 %v140
    %v527 = vunpack.c.h.b16 %v140
    %v528 = vunpack.c.l.b16 %v141
    %v529 = vunpack.c.h.b16 %v141
    %v530 = vunpack.c.l.b16 %v142
    %v531 = vunpack.c.h.b16 %v142
    %v532 = vunpack.c.l.b16 %v143
    %v533 = vunpack.c.h.b16 %v143
    %v534 = vunpack.c.l.b16 %v144
    %v535 = vunpack.c.h.b16 %v144
    %v536 = vunpack.c.l.b16 %v145
    %v537 = vunpack.c.h.b16 %v145
    %v538 = vunpack.c.l.b16 %v146
    %v539 = vunpack.c.h.b16 %v146
    %v540 = vunpack.c.l.b16 %v147
    %v541 = vunpack.c.h.b16 %v147
    %v542 = vunpack.c.l.b16 %v148
    %v543 = vunpack.c.h.b16 %v148
    %v544 = vunpack.c.l.b16 %v149
    %v545 = vunpack.c.h.b16 %v149
    %v546 = vunpack.c.l.b16 %v150
    %v547 = vunpack.c.h.b16 %v150
    %v548 = vunpack.c.l.b16 %v151
    %v549 = vunpack.c.h.b16 %v151
    %v550 = vunpack.c.l.b16 %v152
    %v551 = vunpack.c.h.b16 %v152
    %v552 = vunpack.c.l.b16 %v153
    %v553 = vunpack.c.h.b16 %v153
    %v554 = vunpack.c.l.b16 %v154
    %v555 = vunpack.c.h.b16 %v154
    %v556 = vunpack.c.l.b16 %v155
    %v557 = vunpack.c.h.b16 %v155
    %v558 = vunpack.c.l.b16 %v156
    %v559 = vunpack.c.h.b16 %v156
    %v560 = vunpack.c.l.b16 %v157
    %v561 = vunpack.c.h.b16 %v157
    %v562 = vunpack.c.l.b16 %v158
    %v563 = vunpack.c.h.b16 %v158
    %v564 = vunpack.c.l.b16 %v159
    %v565 = vunpack.c.h.b16 %v159
    %v566 = vunpack.c.l.b16 %v160
    %v567 = vunpack.c.h.b16 %v160
    %v568 = vunpack.c.l.b16 %v161
    %v569 = vunpack.c.h.b16 %v161
    %v570 = vunpack.c.l.b16 %v162
    %v571 = vunpack.c.h.b16 %v162
    %v572 = vunpack.c.l.b16 %v163
    %v573 = vunpack.c.h.b16 %v163
    %v574 = vunpack.c.l.b16 %v164
    %v575 = vunpack.c.h.b16 %v164
    %v576 = vunpack.c.l.b16 %v165
    %v577 = vunpack.c.h.b16 %v165
    %v578 = vunpack.c.l.b16 %v166
    %v579 = vunpack.c.h.b16 %v166
    %v580 = vunpack.c.l.b16 %v167
    %v581 = vunpack.c.h.b16 %v167
    %v582 = vpack.c.b16 %v330, %v326
    %v583 = vpack.c.b16 %v331, %v327
    %v584 = vpack.c.b16 %v332, %v328
    %v585 = vpack.c.b16 %v333, %v329
    %v586 = vpack.c.b16 %v338, %v334
    %v587 = vpack.c.b16 %v339, %v335
    %v588 = vpack.c.b16 %v340, %v336
    %v589 = vpack.c.b16 %v341, %v337
    %v590 = vpack.c.b16 %v346, %v342
    %v591 = vpack.c.b16 %v347, %v343
    %v592 = vpack.c.b16 %v348, %v344
    %v593 = vpack.c.b16 %v349, %v345
    %v594 = vpack.c.b16 %v354, %v350
    %v595 = vpack.c.b16 %v355, %v351
    %v596 = vpack.c.b16 %v356, %v352
    %v597 = vpack.c.b16 %v357, %v353
    %v598 = vpack.c.b16 %v362, %v358
    %v599 = vpack.c.b16 %v363, %v359
    %v600 = vpack.c.b16 %v364, %v360
    %v601 = vpack.c.b16 %v365, %v361
    %v602 = vpack.c.b16 %v370, %v366
    %v603 = vpack.c.b16 %v371, %v367
    %v604 = vpack.c.b16 %v372, %v368
    %v605 = vpack.c.b16 %v373, %v369
    %v606 = vpack.c.b16 %v378, %v374
    %v607 = vpack.c.b16 %v379, %v375
    %v608 = vpack.c.b16 %v380, %v376
    %v609 = vpack.c.b16 %v381, %v377
    %v610 = vpack.c.b16 %v386, %v382
    %v611 = vpack.c.b16 %v387, %v383
    %v612 = vpack.c.b16 %v388, %v384
    %v613 = vpack.c.b16 %v389, %v385
    %v614 = vpack.c.b16 %v394, %v390
    %v615 = vpack.c.b16 %v395, %v391
    %v616 = vpack.c.b16 %v396, %v392
    %v617 = vpack.c.b16 %v397, %v393
    %v618 = vpack.c.b16 %v402, %v398
    %v619 = vpack.c.b16 %v403, %v399
    %v620 = vpack.c.b16 %v404, %v400
    %v621 = vpack.c.b16 %v405, %v401
    %v622 = vpack.c.b16 %v410, %v406
    %v623 = vpack.c.b16 %v411, %v407
    %v624 = vpack.c.b16 %v412, %v408
    %v625 = vpack.c.b16 %v413, %v409
    %v626 = vpack.c.b16 %v418, %v414
    %v627 = vpack.c.b16 %v419, %v415
    %v628 = vpack.c.b16 %v420, %v416
    %v629 = vpack.c.b16 %v421, %v417
    %v630 = vpack.c.b16 %v426, %v422
    %v631 = vpack.c.b16 %v427, %v423
    %v632 = vpack.c.b16 %v428, %v424
    %v633 = vpack.c.b16 %v429, %v425
    %v634 = vpack.c.b16 %v434, %v430
    %v635 = vpack.c.b16 %v435, %v431
    %v636 = vpack.c.b16 %v436, %v432
    %v637 = vpack.c.b16 %v437, %v433
    %v638 = vpack.c.b16 %v442, %v438
    %v639 = vpack.c.b16 %v443, %v439
    %v640 = vpack.c.b16 %v444, %v440
    %v641 = vpack.c.b16 %v445, %v441
    %v642 = vpack.c.b16 %v450, %v446
    %v643 = vpack.c.b16 %v451, %v447
    %v644 = vpack.c.b16 %v452, %v448
    %v645 = vpack.c.b16 %v453, %v449
    %v646 = vpack.c.b16 %v458, %v454
    %v647 = vpack.c.b16 %v459, %v455
    %v648 = vpack.c.b16 %v460, %v456
    %v649 = vpack.c.b16 %v461, %v457
    %v650 = vpack.c.b16 %v466, %v462
    %v651 = vpack.c.b16 %v467, %v463
    %v652 = vpack.c.b16 %v468, %v464
    %v653 = vpack.c.b16 %v469, %v465
    %v654 = vpack.c.b16 %v474, %v470
    %v655 = vpack.c.b16 %v475, %v471
    %v656 = vpack.c.b16 %v476, %v472
    %v657 = vpack.c.b16 %v477, %v473
    %v658 = vpack.c.b16 %v482, %v478
    %v659 = vpack.c.b16 %v483, %v479
    %v660 = vpack.c.b16 %v484, %v480
    %v661 = vpack.c.b16 %v485, %v481
    %v662 = vpack.c.b16 %v490, %v486
    %v663 = vpack.c.b16 %v491, %v487
    %v664 = vpack.c.b16 %v492, %v488
    %v665 = vpack.c.b16 %v493, %v489
    %v666 = vpack.c.b16 %v498, %v494
    %v667 = vpack.c.b16 %v499, %v495
    %v668 = vpack.c.b16 %v500, %v496
    %v669 = vpack.c.b16 %v501, %v497
    %v670 = vpack.c.b16 %v506, %v502
    %v671 = vpack.c.b16 %v507, %v503
    %v672 = vpack.c.b16 %v508, %v504
    %v673 = vpack.c.b16 %v509, %v505
    %v674 = vpack.c.b16 %v514, %v510
    %v675 = vpack.c.b16 %v515, %v511
    %v676 = vpack.c.b16 %v516, %v512
    %v677 = vpack.c.b16 %v517, %v513
    %v678 = vpack.c.b16 %v522, %v518
    %v679 = vpack.c.b16 %v523, %v519
    %v680 = vpack.c.b16 %v524, %v520
    %v681 = vpack.c.b16 %v525, %v521
    %v682 = vpack.c.b16 %v530, %v526
    %v683 = vpack.c.b16 %v531, %v527
    %v684 = vpack.c.b16 %v532, %v528
    %v685 = vpack.c.b16 %v533, %v529
    %v686 = vpack.c.b16 %v538, %v534
    %v687 = vpack.c.b16 %v539, %v535
    %v688 = vpack.c.b16 %v540, %v536
    %v689 = vpack.c.b16 %v541, %v537
    %v690 = vpack.c.b16 %v546, %v542
    %v691 = vpack.c.b16 %v547, %v543
    %v692 = vpack.c.b16 %v548, %v544
    %v693 = vpack.c.b16 %v549, %v545
    %v694 = vpack.c.b16 %v554, %v550
    %v695 = vpack.c.b16 %v555, %v551
    %v696 = vpack.c.b16 %v556, %v552
    %v697 = vpack.c.b16 %v557, %v553
    %v698 = vpack.c.b16 %v562, %v558
    %v699 = vpack.c.b16 %v563, %v559
    %v700 = vpack.c.b16 %v564, %v560
    %v701 = vpack.c.b16 %v565, %v561
    %v702 = vpack.c.b16 %v570, %v566
    %v703 = vpack.c.b16 %v571, %v567
    %v704 = vpack.c.b16 %v572, %v568
    %v705 = vpack.c.b16 %v573, %v569
    %v706 = vpack.c.b16 %v578, %v574
    %v707 = vpack.c.b16 %v579, %v575
    %v708 = vpack.c.b16 %v580, %v576
    %v709 = vpack.c.b16 %v581, %v577
    %838 = vmatpush.bf16.msra.mxu0 %v610
    %839 = vmatpush.bf16.msra.mxu0 %v606
    %840 = vmatpush.bf16.msra.mxu0 %v602
    %841 = vmatpush.bf16.msra.mxu0 %v598
    %842 = vmatpush.bf16.msra.mxu0 %v594
    %843 = vmatpush.bf16.msra.mxu0 %v590
    %844 = vmatpush.bf16.msra.mxu0 %v586
    %845 = vmatpush.bf16.msra.mxu0 %v582
    %846 = vmatmul.bf16.gmra.mxu0 %v190
    %v847 = vpop.f32.mrf.mxu0
    %v848 = vadd.f32 %v170, %v847
    %v849 = vpop.f32.mrf.mxu0
    %v850 = vadd.f32 %v170, %v849
    %851 = vdwg.mxu0
    %852 = vmatpush.bf16.msra.mxu0 %v642
    %853 = vmatpush.bf16.msra.mxu0 %v638
    %854 = vmatpush.bf16.msra.mxu0 %v634
    %855 = vmatpush.bf16.msra.mxu0 %v630
    %856 = vmatpush.bf16.msra.mxu0 %v626
    %857 = vmatpush.bf16.msra.mxu0 %v622
    %858 = vmatpush.bf16.msra.mxu0 %v618
    %859 = vmatpush.bf16.msra.mxu0 %v614
    %860 = vmatmul.bf16.gmra.mxu0 %v191
    %v861 = vpop.f32.mrf.mxu0
    %v862 = vadd.f32 %v848, %v861
    %v863 = vpop.f32.mrf.mxu0
    %v864 = vadd.f32 %v850, %v863
    %865 = vdwg.mxu0
    %866 = vmatpush.bf16.msra.mxu0 %v674
    %867 = vmatpush.bf16.msra.mxu0 %v670
    %868 = vmatpush.bf16.msra.mxu0 %v666
    %869 = vmatpush.bf16.msra.mxu0 %v662
    %870 = vmatpush.bf16.msra.mxu0 %v658
    %871 = vmatpush.bf16.msra.mxu0 %v654
    %872 = vmatpush.bf16.msra.mxu0 %v650
    %873 = vmatpush.bf16.msra.mxu0 %v646
    %874 = vmatmul.bf16.gmra.mxu0 %v192
    %v875 = vpop.f32.mrf.mxu0
    %v876 = vadd.f32 %v862, %v875
    %v877 = vpop.f32.mrf.mxu0
    %v878 = vadd.f32 %v864, %v877
    %879 = vdwg.mxu0
    %880 = vmatpush.bf16.msra.mxu0 %v706
    %881 = vmatpush.bf16.msra.mxu0 %v702
    %882 = vmatpush.bf16.msra.mxu0 %v698
    %883 = vmatpush.bf16.msra.mxu0 %v694
    %884 = vmatpush.bf16.msra.mxu0 %v690
    %885 = vmatpush.bf16.msra.mxu0 %v686
    %886 = vmatpush.bf16.msra.mxu0 %v682
    %887 = vmatpush.bf16.msra.mxu0 %v678
    %888 = vmatmul.bf16.gmra.mxu0 %v193
    %v889 = vpop.f32.mrf.mxu0
    %v890 = vadd.f32 %v876, %v889
    %v891 = vpop.f32.mrf.mxu0
    %v892 = vadd.f32 %v878, %v891
    %893 = vdwg.mxu0
    %894 = vmatpush.bf16.msra.mxu0 %v611
    %895 = vmatpush.bf16.msra.mxu0 %v607
    %896 = vmatpush.bf16.msra.mxu0 %v603
    %897 = vmatpush.bf16.msra.mxu0 %v599
    %898 = vmatpush.bf16.msra.mxu0 %v595
    %899 = vmatpush.bf16.msra.mxu0 %v591
    %900 = vmatpush.bf16.msra.mxu0 %v587
    %901 = vmatpush.bf16.msra.mxu0 %v583
    %902 = vmatmul.bf16.gmra.mxu0 %v190
    %v903 = vpop.f32.mrf.mxu0
    %v904 = vadd.f32 %v171, %v903
    %v905 = vpop.f32.mrf.mxu0
    %v906 = vadd.f32 %v171, %v905
    %907 = vdwg.mxu0
    %908 = vmatpush.bf16.msra.mxu0 %v643
    %909 = vmatpush.bf16.msra.mxu0 %v639
    %910 = vmatpush.bf16.msra.mxu0 %v635
    %911 = vmatpush.bf16.msra.mxu0 %v631
    %912 = vmatpush.bf16.msra.mxu0 %v627
    %913 = vmatpush.bf16.msra.mxu0 %v623
    %914 = vmatpush.bf16.msra.mxu0 %v619
    %915 = vmatpush.bf16.msra.mxu0 %v615
    %916 = vmatmul.bf16.gmra.mxu0 %v191
    %v917 = vpop.f32.mrf.mxu0
    %v918 = vadd.f32 %v904, %v917
    %v919 = vpop.f32.mrf.mxu0
    %v920 = vadd.f32 %v906, %v919
    %921 = vdwg.mxu0
    %922 = vmatpush.bf16.msra.mxu0 %v675
    %923 = vmatpush.bf16.msra.mxu0 %v671
    %924 = vmatpush.bf16.msra.mxu0 %v667
    %925 = vmatpush.bf16.msra.mxu0 %v663
    %926 = vmatpush.bf16.msra.mxu0 %v659
    %927 = vmatpush.bf16.msra.mxu0 %v655
    %928 = vmatpush.bf16.msra.mxu0 %v651
    %929 = vmatpush.bf16.msra.mxu0 %v647
    %930 = vmatmul.bf16.gmra.mxu0 %v192
    %v931 = vpop.f32.mrf.mxu0
    %v932 = vadd.f32 %v918, %v931
    %v933 = vpop.f32.mrf.mxu0
    %v934 = vadd.f32 %v920, %v933
    %935 = vdwg.mxu0
    %936 = vmatpush.bf16.msra.mxu0 %v707
    %937 = vmatpush.bf16.msra.mxu0 %v703
    %938 = vmatpush.bf16.msra.mxu0 %v699
    %939 = vmatpush.bf16.msra.mxu0 %v695
    %940 = vmatpush.bf16.msra.mxu0 %v691
    %941 = vmatpush.bf16.msra.mxu0 %v687
    %942 = vmatpush.bf16.msra.mxu0 %v683
    %943 = vmatpush.bf16.msra.mxu0 %v679
    %944 = vmatmul.bf16.gmra.mxu0 %v193
    %v945 = vpop.f32.mrf.mxu0
    %v946 = vadd.f32 %v932, %v945
    %v947 = vpop.f32.mrf.mxu0
    %v948 = vadd.f32 %v934, %v947
    %949 = vdwg.mxu0
    %950 = vmatpush.bf16.msra.mxu0 %v612
    %951 = vmatpush.bf16.msra.mxu0 %v608
    %952 = vmatpush.bf16.msra.mxu0 %v604
    %953 = vmatpush.bf16.msra.mxu0 %v600
    %954 = vmatpush.bf16.msra.mxu0 %v596
    %955 = vmatpush.bf16.msra.mxu0 %v592
    %956 = vmatpush.bf16.msra.mxu0 %v588
    %957 = vmatpush.bf16.msra.mxu0 %v584
    %958 = vmatmul.bf16.gmra.mxu0 %v190
    %v959 = vpop.f32.mrf.mxu0
    %v960 = vadd.f32 %v172, %v959
    %v961 = vpop.f32.mrf.mxu0
    %v962 = vadd.f32 %v172, %v961
    %963 = vdwg.mxu0
    %964 = vmatpush.bf16.msra.mxu0 %v644
    %965 = vmatpush.bf16.msra.mxu0 %v640
    %966 = vmatpush.bf16.msra.mxu0 %v636
    %967 = vmatpush.bf16.msra.mxu0 %v632
    %968 = vmatpush.bf16.msra.mxu0 %v628
    %969 = vmatpush.bf16.msra.mxu0 %v624
    %970 = vmatpush.bf16.msra.mxu0 %v620
    %971 = vmatpush.bf16.msra.mxu0 %v616
    %972 = vmatmul.bf16.gmra.mxu0 %v191
    %v973 = vpop.f32.mrf.mxu0
    %v974 = vadd.f32 %v960, %v973
    %v975 = vpop.f32.mrf.mxu0
    %v976 = vadd.f32 %v962, %v975
    %977 = vdwg.mxu0
    %978 = vmatpush.bf16.msra.mxu0 %v676
    %979 = vmatpush.bf16.msra.mxu0 %v672
    %980 = vmatpush.bf16.msra.mxu0 %v668
    %981 = vmatpush.bf16.msra.mxu0 %v664
    %982 = vmatpush.bf16.msra.mxu0 %v660
    %983 = vmatpush.bf16.msra.mxu0 %v656
    %984 = vmatpush.bf16.msra.mxu0 %v652
    %985 = vmatpush.bf16.msra.mxu0 %v648
    %986 = vmatmul.bf16.gmra.mxu0 %v192
    %v987 = vpop.f32.mrf.mxu0
    %v988 = vadd.f32 %v974, %v987
    %v989 = vpop.f32.mrf.mxu0
    %v990 = vadd.f32 %v976, %v989
    %991 = vdwg.mxu0
    %992 = vmatpush.bf16.msra.mxu0 %v708
    %993 = vmatpush.bf16.msra.mxu0 %v704
    %994 = vmatpush.bf16.msra.mxu0 %v700
    %995 = vmatpush.bf16.msra.mxu0 %v696
    %996 = vmatpush.bf16.msra.mxu0 %v692
    %997 = vmatpush.bf16.msra.mxu0 %v688
    %998 = vmatpush.bf16.msra.mxu0 %v684
    %999 = vmatpush.bf16.msra.mxu0 %v680
    %1000 = vmatmul.bf16.gmra.mxu0 %v193
    %v1001 = vpop.f32.mrf.mxu0
    %v1002 = vadd.f32 %v988, %v1001
    %v1003 = vpop.f32.mrf.mxu0
    %v1004 = vadd.f32 %v990, %v1003
    %1005 = vdwg.mxu0
    %1006 = vmatpush.bf16.msra.mxu0 %v613
    %1007 = vmatpush.bf16.msra.mxu0 %v609
    %1008 = vmatpush.bf16.msra.mxu0 %v605
    %1009 = vmatpush.bf16.msra.mxu0 %v601
    %1010 = vmatpush.bf16.msra.mxu0 %v597
    %1011 = vmatpush.bf16.msra.mxu0 %v593
    %1012 = vmatpush.bf16.msra.mxu0 %v589
    %1013 = vmatpush.bf16.msra.mxu0 %v585
    %1014 = vmatmul.bf16.gmra.mxu0 %v190
    %v1015 = vpop.f32.mrf.mxu0
    %v1016 = vadd.f32 %v173, %v1015
    %v1017 = vpop.f32.mrf.mxu0
    %v1018 = vadd.f32 %v173, %v1017
    %1019 = vdwg.mxu0
    %1020 = vmatpush.bf16.msra.mxu0 %v645
    %1021 = vmatpush.bf16.msra.mxu0 %v641
    %1022 = vmatpush.bf16.msra.mxu0 %v637
    %1023 = vmatpush.bf16.msra.mxu0 %v633
    %1024 = vmatpush.bf16.msra.mxu0 %v629
    %1025 = vmatpush.bf16.msra.mxu0 %v625
    %1026 = vmatpush.bf16.msra.mxu0 %v621
    %1027 = vmatpush.bf16.msra.mxu0 %v617
    %1028 = vmatmul.bf16.gmra.mxu0 %v191
    %v1029 = vpop.f32.mrf.mxu0
    %v1030 = vadd.f32 %v1016, %v1029
    %v1031 = vpop.f32.mrf.mxu0
    %v1032 = vadd.f32 %v1018, %v1031
    %1033 = vdwg.mxu0
    %1034 = vmatpush.bf16.msra.mxu0 %v677
    %1035 = vmatpush.bf16.msra.mxu0 %v673
    %1036 = vmatpush.bf16.msra.mxu0 %v669
    %1037 = vmatpush.bf16.msra.mxu0 %v665
    %1038 = vmatpush.bf16.msra.mxu0 %v661
    %1039 = vmatpush.bf16.msra.mxu0 %v657
    %1040 = vmatpush.bf16.msra.mxu0 %v653
    %1041 = vmatpush.bf16.msra.mxu0 %v649
    %1042 = vmatmul.bf16.gmra.mxu0 %v192
    %v1043 = vpop.f32.mrf.mxu0
    %v1044 = vadd.f32 %v1030, %v1043
    %v1045 = vpop.f32.mrf.mxu0
    %v1046 = vadd.f32 %v1032, %v1045
    %1047 = vdwg.mxu0
    %1048 = vmatpush.bf16.msra.mxu0 %v709
    %1049 = vmatpush.bf16.msra.mxu0 %v705
    %1050 = vmatpush.bf16.msra.mxu0 %v701
    %1051 = vmatpush.bf16.msra.mxu0 %v697
    %1052 = vmatpush.bf16.msra.mxu0 %v693
    %1053 = vmatpush.bf16.msra.mxu0 %v689
    %1054 = vmatpush.bf16.msra.mxu0 %v685
    %1055 = vmatpush.bf16.msra.mxu0 %v681
    %1056 = vmatmul.bf16.gmra.mxu0 %v193
    %v1057 = vpop.f32.mrf.mxu0
    %v1058 = vadd.f32 %v1044, %v1057
    %v1059 = vpop.f32.mrf.mxu0
    %v1060 = vadd.f32 %v1046, %v1059
    %1061 = vdwg.mxu0
    %v1062 = vmax.f32 %v890, 0.0
    %v1063 = vmax.f32 %v946, 0.0
    %v1064 = vmax.f32 %v1002, 0.0
    %v1065 = vmax.f32 %v1058, 0.0
    %v1066 = vmax.f32 %v892, 0.0
    %v1067 = vmax.f32 %v948, 0.0
    %v1068 = vmax.f32 %v1004, 0.0
    %v1069 = vmax.f32 %v1060, 0.0
    %v1070 = vpack.c.bf16 %v1066, %v1062
    %v1071 = vpack.c.bf16 %v1067, %v1063
    %v1072 = vpack.c.bf16 %v1068, %v1064
    %v1073 = vpack.c.bf16 %v1069, %v1065
    %v1074 = vld [vmem:[%s3] sm:$0xf]
    %v1075 = vld [vmem:[%s3 + $0x4] sm:$0xf]
    %v1076 = vld [vmem:[%s3 + $0x8] sm:$0xf]
    %v1077 = vld [vmem:[%s3 + $0xc] sm:$0xf]
    %v1078 = vld [vmem:[%s3 + $0x10] sm:$0xf]
    %v1079 = vld [vmem:[%s3 + $0x14] sm:$0xf]
    %v1080 = vld [vmem:[%s3 + $0x18] sm:$0xf]
    %v1081 = vld [vmem:[%s3 + $0x1c] sm:$0xf]
    %v1082 = vld [vmem:[%s3 + $0x20] sm:$0xf]
    %v1083 = vld [vmem:[%s3 + $0x24] sm:$0xf]
    %v1084 = vld [vmem:[%s3 + $0x28] sm:$0xf]
    %v1085 = vld [vmem:[%s3 + $0x2c] sm:$0xf]
    %v1086 = vld [vmem:[%s3 + $0x30] sm:$0xf]
    %v1087 = vld [vmem:[%s3 + $0x34] sm:$0xf]
    %v1088 = vld [vmem:[%s3 + $0x38] sm:$0xf]
    %v1089 = vld [vmem:[%s3 + $0x3c] sm:$0xf]
    %v1090 = vld [vmem:[%s3 + $0x40] sm:$0xf]
    %v1091 = vld [vmem:[%s3 + $0x44] sm:$0xf]
    %v1092 = vld [vmem:[%s3 + $0x48] sm:$0xf]
    %v1093 = vld [vmem:[%s3 + $0x4c] sm:$0xf]
    %v1094 = vld [vmem:[%s3 + $0x50] sm:$0xf]
    %v1095 = vld [vmem:[%s3 + $0x54] sm:$0xf]
    %v1096 = vld [vmem:[%s3 + $0x58] sm:$0xf]
    %v1097 = vld [vmem:[%s3 + $0x5c] sm:$0xf]
    %v1098 = vld [vmem:[%s3 + $0x60] sm:$0xf]
    %v1099 = vld [vmem:[%s3 + $0x64] sm:$0xf]
    %v1100 = vld [vmem:[%s3 + $0x68] sm:$0xf]
    %v1101 = vld [vmem:[%s3 + $0x6c] sm:$0xf]
    %v1102 = vld [vmem:[%s3 + $0x70] sm:$0xf]
    %v1103 = vld [vmem:[%s3 + $0x74] sm:$0xf]
    %v1104 = vld [vmem:[%s3 + $0x78] sm:$0xf]
    %v1105 = vld [vmem:[%s3 + $0x7c] sm:$0xf]
    %v1106 = vld [vmem:[%s3 + $0x80] sm:$0xf]
    %v1107 = vld [vmem:[%s3 + $0x84] sm:$0xf]
    %v1108 = vld [vmem:[%s3 + $0x88] sm:$0xf]
    %v1109 = vld [vmem:[%s3 + $0x8c] sm:$0xf]
    %v1110 = vld [vmem:[%s3 + $0x90] sm:$0xf]
    %v1111 = vld [vmem:[%s3 + $0x94] sm:$0xf]
    %v1112 = vld [vmem:[%s3 + $0x98] sm:$0xf]
    %v1113 = vld [vmem:[%s3 + $0x9c] sm:$0xf]
    %v1114 = vld [vmem:[%s3 + $0xa0] sm:$0xf]
    %v1115 = vld [vmem:[%s3 + $0xa4] sm:$0xf]
    %v1116 = vld [vmem:[%s3 + $0xa8] sm:$0xf]
    %v1117 = vld [vmem:[%s3 + $0xac] sm:$0xf]
    %v1118 = vld [vmem:[%s3 + $0xb0] sm:$0xf]
    %v1119 = vld [vmem:[%s3 + $0xb4] sm:$0xf]
    %v1120 = vld [vmem:[%s3 + $0xb8] sm:$0xf]
    %v1121 = vld [vmem:[%s3 + $0xbc] sm:$0xf]
    %v1122 = vld [vmem:[%s3 + $0xc0] sm:$0xf]
    %v1123 = vld [vmem:[%s3 + $0xc4] sm:$0xf]
    %v1124 = vld [vmem:[%s3 + $0xc8] sm:$0xf]
    %v1125 = vld [vmem:[%s3 + $0xcc] sm:$0xf]
    %v1126 = vld [vmem:[%s3 + $0xd0] sm:$0xf]
    %v1127 = vld [vmem:[%s3 + $0xd4] sm:$0xf]
    %v1128 = vld [vmem:[%s3 + $0xd8] sm:$0xf]
    %v1129 = vld [vmem:[%s3 + $0xdc] sm:$0xf]
    %v1130 = vld [vmem:[%s3 + $0xe0] sm:$0xf]
    %v1131 = vld [vmem:[%s3 + $0xe4] sm:$0xf]
    %v1132 = vld [vmem:[%s3 + $0xe8] sm:$0xf]
    %v1133 = vld [vmem:[%s3 + $0xec] sm:$0xf]
    %v1134 = vld [vmem:[%s3 + $0xf0] sm:$0xf]
    %v1135 = vld [vmem:[%s3 + $0xf4] sm:$0xf]
    %v1136 = vld [vmem:[%s3 + $0xf8] sm:$0xf]
    %v1137 = vld [vmem:[%s3 + $0xfc] sm:$0xf]
    %v1138 = vld [vmem:[%s4] sm:$0x1]
    %v1140 = vperm.slane %v1138, 0
    %v1206 = vunpack.c.l.b16 %v1074
    %v1207 = vunpack.c.l.b16 %v1075
    %v1208 = vunpack.c.l.b16 %v1076
    %v1209 = vunpack.c.l.b16 %v1077
    %v1210 = vunpack.c.l.b16 %v1078
    %v1211 = vunpack.c.l.b16 %v1079
    %v1212 = vunpack.c.l.b16 %v1080
    %v1213 = vunpack.c.l.b16 %v1081
    %v1214 = vunpack.c.l.b16 %v1082
    %v1215 = vunpack.c.l.b16 %v1083
    %v1216 = vunpack.c.l.b16 %v1084
    %v1217 = vunpack.c.l.b16 %v1085
    %v1218 = vunpack.c.l.b16 %v1086
    %v1219 = vunpack.c.l.b16 %v1087
    %v1220 = vunpack.c.l.b16 %v1088
    %v1221 = vunpack.c.l.b16 %v1089
    %v1222 = vunpack.c.l.b16 %v1090
    %v1223 = vunpack.c.l.b16 %v1091
    %v1224 = vunpack.c.l.b16 %v1092
    %v1225 = vunpack.c.l.b16 %v1093
    %v1226 = vunpack.c.l.b16 %v1094
    %v1227 = vunpack.c.l.b16 %v1095
    %v1228 = vunpack.c.l.b16 %v1096
    %v1229 = vunpack.c.l.b16 %v1097
    %v1230 = vunpack.c.l.b16 %v1098
    %v1231 = vunpack.c.l.b16 %v1099
    %v1232 = vunpack.c.l.b16 %v1100
    %v1233 = vunpack.c.l.b16 %v1101
    %v1234 = vunpack.c.l.b16 %v1102
    %v1235 = vunpack.c.l.b16 %v1103
    %v1236 = vunpack.c.l.b16 %v1104
    %v1237 = vunpack.c.l.b16 %v1105
    %v1238 = vunpack.c.l.b16 %v1106
    %v1239 = vunpack.c.l.b16 %v1107
    %v1240 = vunpack.c.l.b16 %v1108
    %v1241 = vunpack.c.l.b16 %v1109
    %v1242 = vunpack.c.l.b16 %v1110
    %v1243 = vunpack.c.l.b16 %v1111
    %v1244 = vunpack.c.l.b16 %v1112
    %v1245 = vunpack.c.l.b16 %v1113
    %v1246 = vunpack.c.l.b16 %v1114
    %v1247 = vunpack.c.l.b16 %v1115
    %v1248 = vunpack.c.l.b16 %v1116
    %v1249 = vunpack.c.l.b16 %v1117
    %v1250 = vunpack.c.l.b16 %v1118
    %v1251 = vunpack.c.l.b16 %v1119
    %v1252 = vunpack.c.l.b16 %v1120
    %v1253 = vunpack.c.l.b16 %v1121
    %v1254 = vunpack.c.l.b16 %v1122
    %v1255 = vunpack.c.l.b16 %v1123
    %v1256 = vunpack.c.l.b16 %v1124
    %v1257 = vunpack.c.l.b16 %v1125
    %v1258 = vunpack.c.l.b16 %v1126
    %v1259 = vunpack.c.l.b16 %v1127
    %v1260 = vunpack.c.l.b16 %v1128
    %v1261 = vunpack.c.l.b16 %v1129
    %v1262 = vunpack.c.l.b16 %v1130
    %v1263 = vunpack.c.l.b16 %v1131
    %v1264 = vunpack.c.l.b16 %v1132
    %v1265 = vunpack.c.l.b16 %v1133
    %v1266 = vunpack.c.l.b16 %v1134
    %v1267 = vunpack.c.l.b16 %v1135
    %v1268 = vunpack.c.l.b16 %v1136
    %v1269 = vunpack.c.l.b16 %v1137
    %v1270 = vpack.c.b16 %v1207, %v1206
    %v1271 = vpack.c.b16 %v1209, %v1208
    %v1272 = vpack.c.b16 %v1211, %v1210
    %v1273 = vpack.c.b16 %v1213, %v1212
    %v1274 = vpack.c.b16 %v1215, %v1214
    %v1275 = vpack.c.b16 %v1217, %v1216
    %v1276 = vpack.c.b16 %v1219, %v1218
    %v1277 = vpack.c.b16 %v1221, %v1220
    %v1278 = vpack.c.b16 %v1223, %v1222
    %v1279 = vpack.c.b16 %v1225, %v1224
    %v1280 = vpack.c.b16 %v1227, %v1226
    %v1281 = vpack.c.b16 %v1229, %v1228
    %v1282 = vpack.c.b16 %v1231, %v1230
    %v1283 = vpack.c.b16 %v1233, %v1232
    %v1284 = vpack.c.b16 %v1235, %v1234
    %v1285 = vpack.c.b16 %v1237, %v1236
    %v1286 = vpack.c.b16 %v1239, %v1238
    %v1287 = vpack.c.b16 %v1241, %v1240
    %v1288 = vpack.c.b16 %v1243, %v1242
    %v1289 = vpack.c.b16 %v1245, %v1244
    %v1290 = vpack.c.b16 %v1247, %v1246
    %v1291 = vpack.c.b16 %v1249, %v1248
    %v1292 = vpack.c.b16 %v1251, %v1250
    %v1293 = vpack.c.b16 %v1253, %v1252
    %v1294 = vpack.c.b16 %v1255, %v1254
    %v1295 = vpack.c.b16 %v1257, %v1256
    %v1296 = vpack.c.b16 %v1259, %v1258
    %v1297 = vpack.c.b16 %v1261, %v1260
    %v1298 = vpack.c.b16 %v1263, %v1262
    %v1299 = vpack.c.b16 %v1265, %v1264
    %v1300 = vpack.c.b16 %v1267, %v1266
    %v1301 = vpack.c.b16 %v1269, %v1268
    %1334 = vmatpush.bf16.msra.mxu0 %v1277
    %1335 = vmatpush.bf16.msra.mxu0 %v1276
    %1336 = vmatpush.bf16.msra.mxu0 %v1275
    %1337 = vmatpush.bf16.msra.mxu0 %v1274
    %1338 = vmatpush.bf16.msra.mxu0 %v1273
    %1339 = vmatpush.bf16.msra.mxu0 %v1272
    %1340 = vmatpush.bf16.msra.mxu0 %v1271
    %1341 = vmatpush.bf16.msra.mxu0 %v1270
    %1342 = vmatmul.bf16.gmra.mxu0 %v1070
    %v1343 = vpop.f32.mrf.mxu0
    %v1344 = vadd.f32 %v1140, %v1343
    %v1345 = vpop.f32.mrf.mxu0
    %v1346 = vadd.f32 %v1140, %v1345
    %1347 = vdwg.mxu0
    %1348 = vmatpush.bf16.msra.mxu0 %v1285
    %1349 = vmatpush.bf16.msra.mxu0 %v1284
    %1350 = vmatpush.bf16.msra.mxu0 %v1283
    %1351 = vmatpush.bf16.msra.mxu0 %v1282
    %1352 = vmatpush.bf16.msra.mxu0 %v1281
    %1353 = vmatpush.bf16.msra.mxu0 %v1280
    %1354 = vmatpush.bf16.msra.mxu0 %v1279
    %1355 = vmatpush.bf16.msra.mxu0 %v1278
    %1356 = vmatmul.bf16.gmra.mxu0 %v1071
    %v1357 = vpop.f32.mrf.mxu0
    %v1358 = vadd.f32 %v1344, %v1357
    %v1359 = vpop.f32.mrf.mxu0
    %v1360 = vadd.f32 %v1346, %v1359
    %1361 = vdwg.mxu0
    %1362 = vmatpush.bf16.msra.mxu0 %v1293
    %1363 = vmatpush.bf16.msra.mxu0 %v1292
    %1364 = vmatpush.bf16.msra.mxu0 %v1291
    %1365 = vmatpush.bf16.msra.mxu0 %v1290
    %1366 = vmatpush.bf16.msra.mxu0 %v1289
    %1367 = vmatpush.bf16.msra.mxu0 %v1288
    %1368 = vmatpush.bf16.msra.mxu0 %v1287
    %1369 = vmatpush.bf16.msra.mxu0 %v1286
    %1370 = vmatmul.bf16.gmra.mxu0 %v1072
    %v1371 = vpop.f32.mrf.mxu0
    %v1372 = vadd.f32 %v1358, %v1371
    %v1373 = vpop.f32.mrf.mxu0
    %v1374 = vadd.f32 %v1360, %v1373
    %1375 = vdwg.mxu0
    %1376 = vmatpush.bf16.msra.mxu0 %v1301
    %1377 = vmatpush.bf16.msra.mxu0 %v1300
    %1378 = vmatpush.bf16.msra.mxu0 %v1299
    %1379 = vmatpush.bf16.msra.mxu0 %v1298
    %1380 = vmatpush.bf16.msra.mxu0 %v1297
    %1381 = vmatpush.bf16.msra.mxu0 %v1296
    %1382 = vmatpush.bf16.msra.mxu0 %v1295
    %1383 = vmatpush.bf16.msra.mxu0 %v1294
    %1384 = vmatmul.bf16.gmra.mxu0 %v1073
    %v1385 = vpop.f32.mrf.mxu0
    %v1386 = vadd.f32 %v1372, %v1385
    %v1387 = vpop.f32.mrf.mxu0
    %v1388 = vadd.f32 %v1374, %v1387
    %1389 = vdwg.mxu0
    %1390 = vst [vmem:[%s5] sm:$0xff] %v1386
    %1391 = vst [vmem:[%s5 + $0x8] sm:$0xff] %v1388
    // Predicated region
    $region26: #{_lambda_.1} parent=1 // pred_check
      _
    $region27: #{_lambda_.1} parent=1 // pred_check_branch
      %1393 = sbr.rel (0) target = $region29
    $region28: #{_lambda_.1} parent=1 // pred_region
      _
    $region29: #{_lambda_.1} parent=1 // pred_fallthru
      _
    // Predicated region
    $region30: #{_lambda_.1} parent=1 // pred_check
      _
    $region31: #{_lambda_.1} parent=1 // pred_check_branch
      %1395 = sbr.rel (0) target = $region33
    $region32: #{_lambda_.1} parent=1 // pred_region
      _
    $region33: #{_lambda_.1} parent=1 // pred_fallthru
      _
    %1396 = vsyncpa [#allocation3], 1

</llo_original>
